<compile_context>
chip_gen: v6e
topology: v6e:2x2x1
jax: 0.10.0
libtpu: 0.0.40
codegen_flags: <defaults>
</compile_context>

<pallas_src>
import functools

import jax
import jax.numpy as jnp
from jax.experimental import pallas as pl
from jax.experimental.pallas import tpu as pltpu


def _shared_mlp_kernel(x_ref, w_ref, b_ref, o_ref, *, n_per_block, mxu_dtype):
    # x_ref: (TN, C, TL)  w_ref: (O, C)  b_ref: (O, 1)  o_ref: (TN, O, TL)
    w = w_ref[...].astype(mxu_dtype)          # weights stay VMEM-resident across grid
    b = b_ref[...]                            # (O, 1) broadcasts over the lane axis
    for n in range(n_per_block):              # tiny static N-block -> unrolled
        h = jnp.dot(w, x_ref[n].astype(mxu_dtype),
                    preferred_element_type=jnp.float32)      # (O, TL), lane-dense
        o_ref[n] = jnp.maximum(h + b, 0.0).astype(o_ref.dtype)


def fold_conv_bn(w_conv, b_conv, gamma, beta, running_mean, running_var, eps=1e-5):
    """Fold eval-mode BatchNorm1d into the k=1 Conv1d.  Call once at init time."""
    w2d = w_conv[:, :, 0]                            # (O, C): k=1 conv == matmul
    scale = gamma / jnp.sqrt(running_var + eps)      # (O,)
    w_eff = w2d * scale[:, None]                     # (O, C)
    b_eff = (b_conv - running_mean) * scale + beta   # (O,)
    return w_eff, b_eff.reshape(-1, 1)


def _pick_tile(dim, prefs):
    for t in prefs:
        if t <= dim and dim % t == 0:
            return t
    return dim


def shared_mlp_pallas(x, w_eff, b_eff, *, mxu_dtype=jnp.float32):
    """x: (N, C, L) f32, w_eff: (O, C), b_eff: (O, 1) -> relu(bn(conv1x1(x))) (N, O, L)."""
    N, C, L = x.shape
    O = w_eff.shape[0]

    # Lane-dense L tiles (multiples of 128 when L is big); whole batch per step
    # when N is small.
    TL = L if L <= 512 else _pick_tile(L, (512, 256, 128))
    TN = N if N <= 8 else _pick_tile(N, (8, 4, 2))
    # Crude VMEM guard (double-buffered input+output tiles), sized with headroom
    # for v7x's smaller (64 MiB physical / 32 MiB scoped) VMEM.
    vmem_budget = 24 << 20
    while TN > 1 and 2 * 4 * TN * TL * (C + O) > vmem_budget:
        TN = max(1, TN // 2)

    grid = (pl.cdiv(N, TN), pl.cdiv(L, TL))
    kernel = functools.partial(_shared_mlp_kernel,
                               n_per_block=TN, mxu_dtype=mxu_dtype)

    return pl.pallas_call(
        kernel,
        out_shape=jax.ShapeDtypeStruct((N, O, L), jnp.float32),
        grid_spec=pltpu.PrefetchScalarGridSpec(
            num_scalar_prefetch=0,
            grid=grid,
            in_specs=[
                pl.BlockSpec((TN, C, TL), lambda i, j: (i, 0, j)),
                pl.BlockSpec((O, C), lambda i, j: (0, 0)),   # resident weights
                pl.BlockSpec((O, 1), lambda i, j: (0, 0)),   # resident bias
            ],
            out_specs=pl.BlockSpec((TN, O, TL), lambda i, j: (i, 0, j)),
        ),
        compiler_params=pltpu.CompilerParams(
            dimension_semantics=("parallel", "parallel")),
    )(x, w_eff, b_eff)


def _reference(x, w_conv, b_conv, gamma, beta, running_mean, running_var, eps=1e-5):
    """Plain-JAX reference matching Conv1d(k=1) + BatchNorm1d(eval) + ReLU."""
    y = jnp.einsum('oc,ncl->nol', w_conv[:, :, 0], x) + b_conv[None, :, None]
    y = (y - running_mean[None, :, None]) / jnp.sqrt(running_var[None, :, None] + eps)
    y = y * gamma[None, :, None] + beta[None, :, None]
    return jnp.maximum(y, 0.0)


if __name__ == "__main__":
    # module config: SharedMLP(in_channel=4, out_channel=8); input (N, C, L)
    N, C_in, C_out, L = 2, 4, 8, 16
    eps = 1e-5

    key = jax.random.PRNGKey(0)
    k_x, k_w, k_b, k_g, k_be, k_m, k_v = jax.random.split(key, 7)

    x = jax.random.normal(k_x, (N, C_in, L), dtype=jnp.float32)
    # parameter shapes exactly as nn.Conv1d / nn.BatchNorm1d would create them
    w_conv = jax.random.normal(k_w, (C_out, C_in, 1), dtype=jnp.float32) * 0.3
    b_conv = jax.random.normal(k_b, (C_out,), dtype=jnp.float32) * 0.1
    gamma = 1.0 + 0.1 * jax.random.normal(k_g, (C_out,), dtype=jnp.float32)
    beta = 0.1 * jax.random.normal(k_be, (C_out,), dtype=jnp.float32)
    running_mean = 0.1 * jax.random.normal(k_m, (C_out,), dtype=jnp.float32)
    running_var = 1.0 + 0.1 * jnp.abs(jax.random.normal(k_v, (C_out,), dtype=jnp.float32))

    # fold BN into the conv once (hoisted out of the per-call path)
    w_eff, b_eff = fold_conv_bn(w_conv, b_conv, gamma, beta,
                                running_mean, running_var, eps)

    ref = _reference(x, w_conv, b_conv, gamma, beta, running_mean, running_var, eps)

    # f32 MXU-operand path (strict check)
    out = shared_mlp_pallas(x, w_eff, b_eff, mxu_dtype=jnp.float32)
    out = jax.block_until_ready(out)
    assert out.shape == ref.shape, (out.shape, ref.shape)
    assert jnp.allclose(out, ref, atol=1e-4, rtol=1e-4), "f32 mismatch vs reference"

    # bf16 MXU-operand path (v6e/v7x recommendation); f32 accumulation, looser tol
    out_bf16 = jax.block_until_ready(
        shared_mlp_pallas(x, w_eff, b_eff, mxu_dtype=jnp.bfloat16))
    assert jnp.allclose(out_bf16, ref, atol=5e-2, rtol=5e-2), "bf16 mismatch vs reference"

    print("KERNEL_OK")
</pallas_src>

<mosaic_0001>
module attributes {stable_mosaic.version = 11 : i64} {
  func.func @_shared_mlp_kernel(%arg0: i32, %arg1: i32, %arg2: memref<2x4x16xf32, #tpu.memory_space<vmem>>, %arg3: memref<8x4xf32, #tpu.memory_space<vmem>>, %arg4: memref<8x1xf32, #tpu.memory_space<vmem>>, %arg5: memref<2x8x16xf32, #tpu.memory_space<vmem>>) attributes {dimension_semantics = [#tpu.dimension_semantics<parallel>, #tpu.dimension_semantics<parallel>], iteration_bounds = array<i64: 1, 1>, scalar_prefetch = 0 : i64, scratch_operands = 0 : i64, tpu.core_type = #tpu.core_type<tc>, window_params = [{transform_indices = @transform_0, window_bounds = array<i64: 2, 4, 16>}, {pipeline_mode = #tpu.pipeline_mode<synchronous>, transform_indices = @transform_1, window_bounds = array<i64: 8, 4>}, {pipeline_mode = #tpu.pipeline_mode<synchronous>, transform_indices = @transform_2, window_bounds = array<i64: 8, 1>}, {transform_indices = @transform_3, window_bounds = array<i64: 2, 8, 16>}]} {
    %c0 = arith.constant 0 : index
    %c0_0 = arith.constant 0 : index
    %0 = vector.load %arg3[%c0, %c0_0] : memref<8x4xf32, #tpu.memory_space<vmem>>, vector<8x4xf32>
    %c0_1 = arith.constant 0 : index
    %c0_2 = arith.constant 0 : index
    %1 = vector.load %arg4[%c0_1, %c0_2] : memref<8x1xf32, #tpu.memory_space<vmem>>, vector<8x1xf32>
    %c0_3 = arith.constant 0 : index
    %c0_4 = arith.constant 0 : index
    %c0_5 = arith.constant 0 : index
    %2 = vector.load %arg2[%c0_3, %c0_4, %c0_5] : memref<2x4x16xf32, #tpu.memory_space<vmem>>, vector<1x4x16xf32>
    %3 = vector.shape_cast %2 : vector<1x4x16xf32> to vector<4x16xf32>
    %cst = arith.constant dense<0.000000e+00> : vector<8x16xf32>
    %4 = tpu.matmul %0, %3, %cst {dimension_numbers = #tpu.dot_dimension_numbers<[1], [0], [0], [1], [0, 0, 1, 1], [], []>} : vector<8x4xf32>, vector<4x16xf32>, vector<8x16xf32> -> vector<8x16xf32>
    %5 = vector.broadcast %1 : vector<8x1xf32> to vector<8x16xf32>
    %6 = arith.addf %4, %5 : vector<8x16xf32>
    %cst_6 = arith.constant 0.000000e+00 : f32
    %7 = vector.broadcast %cst_6 : f32 to vector<8x16xf32>
    %8 = arith.maximumf %6, %7 : vector<8x16xf32>
    %c0_7 = arith.constant 0 : index
    %c0_8 = arith.constant 0 : index
    %c0_9 = arith.constant 0 : index
    %9 = vector.load %arg5[%c0_7, %c0_8, %c0_9] : memref<2x8x16xf32, #tpu.memory_space<vmem>>, vector<1x8x16xf32>
    %10 = vector.shape_cast %9 : vector<1x8x16xf32> to vector<8x16xf32>
    %11 = vector.shape_cast %8 : vector<8x16xf32> to vector<1x8x16xf32>
    tpu.vector_store %arg5[%c0_7, %c0_8, %c0_9], %11 {strides = array<i32>} : memref<2x8x16xf32, #tpu.memory_space<vmem>>, vector<1x8x16xf32>,
    %c1 = arith.constant 1 : index
    %c0_10 = arith.constant 0 : index
    %c0_11 = arith.constant 0 : index
    %12 = vector.load %arg2[%c1, %c0_10, %c0_11] : memref<2x4x16xf32, #tpu.memory_space<vmem>>, vector<1x4x16xf32>
    %13 = vector.shape_cast %12 : vector<1x4x16xf32> to vector<4x16xf32>
    %cst_12 = arith.constant dense<0.000000e+00> : vector<8x16xf32>
    %14 = tpu.matmul %0, %13, %cst_12 {dimension_numbers = #tpu.dot_dimension_numbers<[1], [0], [0], [1], [0, 0, 1, 1], [], []>} : vector<8x4xf32>, vector<4x16xf32>, vector<8x16xf32> -> vector<8x16xf32>
    %15 = vector.broadcast %1 : vector<8x1xf32> to vector<8x16xf32>
    %16 = arith.addf %14, %15 : vector<8x16xf32>
    %cst_13 = arith.constant 0.000000e+00 : f32
    %17 = vector.broadcast %cst_13 : f32 to vector<8x16xf32>
    %18 = arith.maximumf %16, %17 : vector<8x16xf32>
    %c1_14 = arith.constant 1 : index
    %c0_15 = arith.constant 0 : index
    %c0_16 = arith.constant 0 : index
    %19 = vector.load %arg5[%c1_14, %c0_15, %c0_16] : memref<2x8x16xf32, #tpu.memory_space<vmem>>, vector<1x8x16xf32>
    %20 = vector.shape_cast %19 : vector<1x8x16xf32> to vector<8x16xf32>
    %21 = vector.shape_cast %18 : vector<8x16xf32> to vector<1x8x16xf32>
    tpu.vector_store %arg5[%c1_14, %c0_15, %c0_16], %21 {strides = array<i32>} : memref<2x8x16xf32, #tpu.memory_space<vmem>>, vector<1x8x16xf32>,
    return
  }
  func.func @transform_0(%arg0: i32, %arg1: i32) -> (i32, i32, i32) {
    %c0_i32 = arith.constant 0 : i32
    %c0_i32_0 = arith.constant 0 : i32
    return %arg0, %c0_i32, %arg1 : i32, i32, i32
  }
  func.func @transform_1(%arg0: i32, %arg1: i32) -> (i32, i32) {
    %c0_i32 = arith.constant 0 : i32
    %c0_i32_0 = arith.constant 0 : i32
    %c0_i32_1 = arith.constant 0 : i32
    return %c0_i32, %c0_i32_0 : i32, i32
  }
  func.func @transform_2(%arg0: i32, %arg1: i32) -> (i32, i32) {
    %c0_i32 = arith.constant 0 : i32
    %c0_i32_0 = arith.constant 0 : i32
    %c0_i32_1 = arith.constant 0 : i32
    return %c0_i32, %c0_i32_0 : i32, i32
  }
  func.func @transform_3(%arg0: i32, %arg1: i32) -> (i32, i32, i32) {
    %c0_i32 = arith.constant 0 : i32
    %c0_i32_0 = arith.constant 0 : i32
    return %arg0, %c0_i32, %arg1 : i32, i32, i32
  }
}

</mosaic_0001>

<llo_original>
// kernel: tpu_custom_call.1
$region0: #{tpu_custom_call.1}
  #allocation0 [shape = 'u32[]', space=smem, size = 0x4, offset = 0x4, fixed_abs, tag = 'smem constant byte address 0x4 - core index']
  #allocation1 [shape = 'u32[144,128]{1,0:T(1,128)}', space=vmem, size = 0x12000, scoped, tag = 'internal scratch']
  %s0 = inlined_call_operand.vmem [shape: f32[2,4,16], index: 0, kind: input, shape index: {}]
  %s1 = inlined_call_operand.vmem [shape: f32[8,4], index: 1, kind: input, shape index: {}]
  %s2 = inlined_call_operand.vmem [shape: f32[8,1], index: 2, kind: input, shape index: {}]
  %s3 = inlined_call_operand.hbm [shape: f32[2,8,16], index: 3, kind: output, shape index: {}]
  %s4 = sld [smem:[#allocation0]]
  $region22: #{tpu_custom_call.1} parent=0
    _
  %s6 = ssub.s32 1, %s4
  %s7 = scalar_select 0, %s6, %s4
  $region1: #{tpu_custom_call.1} parent=0
    #allocation2 [shape = 'u8[8192]{0}', space=vmem, size = 0x2000, scoped, tag = 'output window, operand 0, single buffered']
    #allocation3 [shape = 's32[1]{0}', space=sflag, size = 0x4, scoped, tag = 'scoped memory for tpu_custom_call.1']
    %8 = vsyncpa [#allocation3], 0
    // Predicated region
    $region2: #{tpu_custom_call.1} parent=1 // pred_check
      _
    $region3: #{tpu_custom_call.1} parent=1 // pred_check_branch
      %10 = sbr.rel (0) target = $region5
    $region4: #{tpu_custom_call.1} parent=1 // pred_region
      _
    $region5: #{tpu_custom_call.1} parent=1 // pred_fallthru
      _
    // Predicated region
    $region6: #{tpu_custom_call.1} parent=1 // pred_check
      _
    $region7: #{tpu_custom_call.1} parent=1 // pred_check_branch
      %12 = sbr.rel (0) target = $region9
    $region8: #{tpu_custom_call.1} parent=1 // pred_region
      _
    $region9: #{tpu_custom_call.1} parent=1 // pred_fallthru
      _
    // Predicated region
    $region10: #{tpu_custom_call.1} parent=1 // pred_check
      _
    $region11: #{tpu_custom_call.1} parent=1 // pred_check_branch
      %14 = sbr.rel (0) target = $region13
    $region12: #{tpu_custom_call.1} parent=1 // pred_region
      _
    $region13: #{tpu_custom_call.1} parent=1 // pred_fallthru
      _
    %v15 = vld [vmem:[%s1] sm:$0xff]
    %v16 = vld [vmem:[%s2] sm:$0xff]
    %v17 = vld [vmem:[%s0] sm:$0xf]
    %19 = vset.pattern.permute.xlu0 0
    %20 = vperm.xlu0 %19, %v16
    %v21 = vpop.permute.xlu0 %20
    %vm23 = vcmask 31744
    %v25 = vsel %vm23, %v15, 0
    %vm27 = vcmask 1043456
    %v29 = vsel %vm27, %v17, 0
    %31 = vmatprep.subr.mxu0 0.0
    %32 = vmatpush1.msra.mxu0 0.0
    %33 = vmatprep.subr.mxu0 0.0
    %34 = vmatpush1.msra.mxu0 0.0
    %35 = vmatprep.subr.mxu0 0.0
    %36 = vmatpush1.msra.mxu0 0.0
    %37 = vmatprep.subr.mxu0 0.0
    %38 = vmatpush1.msra.mxu0 0.0
    %39 = vmatprep.subr.mxu0 0.0
    %40 = vmatpush1.msra.mxu0 0.0
    %41 = vmatprep.subr.mxu0 0.0
    %42 = vmatpush1.msra.mxu0 0.0
    %43 = vmatprep.subr.mxu0 0.0
    %44 = vmatpush1.msra.mxu0 0.0
    %45 = vmatprep.subr.mxu0 0.0
    %46 = vmatpush1.msra.mxu0 0.0
    %47 = vmatprep.subr.mxu0 0.0
    %48 = vmatpush1.msra.mxu0 0.0
    %49 = vmatprep.subr.mxu0 0.0
    %50 = vmatpush1.msra.mxu0 0.0
    %51 = vmatprep.subr.mxu0 0.0
    %52 = vmatpush1.msra.mxu0 0.0
    %53 = vmatprep.subr.mxu0 0.0
    %54 = vmatpush1.msra.mxu0 0.0
    %55 = vmatprep.subr.mxu0 0.0
    %56 = vmatpush1.msra.mxu0 0.0
    %57 = vmatprep.subr.mxu0 0.0
    %58 = vmatpush1.msra.mxu0 0.0
    %59 = vmatprep.subr.mxu0 0.0
    %60 = vmatpush1.msra.mxu0 0.0
    %61 = vmatprep.subr.mxu0 0.0
    %62 = vmatpush1.msra.mxu0 %v29
    %63 = vmatprep.subr.mxu0 0.0
    %64 = vmatpush2.msra.mxu0 0.0
    %65 = vmatprep.subr.mxu0 0.0
    %66 = vmatpush2.msra.mxu0 0.0
    %67 = vmatprep.subr.mxu0 0.0
    %68 = vmatpush2.msra.mxu0 0.0
    %69 = vmatprep.subr.mxu0 0.0
    %70 = vmatpush2.msra.mxu0 0.0
    %71 = vmatprep.subr.mxu0 0.0
    %72 = vmatpush2.msra.mxu0 0.0
    %73 = vmatprep.subr.mxu0 0.0
    %74 = vmatpush2.msra.mxu0 0.0
    %75 = vmatprep.subr.mxu0 0.0
    %76 = vmatpush2.msra.mxu0 0.0
    %77 = vmatprep.subr.mxu0 0.0
    %78 = vmatpush2.msra.mxu0 0.0
    %79 = vmatprep.subr.mxu0 0.0
    %80 = vmatpush2.msra.mxu0 0.0
    %81 = vmatprep.subr.mxu0 0.0
    %82 = vmatpush2.msra.mxu0 0.0
    %83 = vmatprep.subr.mxu0 0.0
    %84 = vmatpush2.msra.mxu0 0.0
    %85 = vmatprep.subr.mxu0 0.0
    %86 = vmatpush2.msra.mxu0 0.0
    %87 = vmatprep.subr.mxu0 0.0
    %88 = vmatpush2.msra.mxu0 0.0
    %89 = vmatprep.subr.mxu0 0.0
    %90 = vmatpush2.msra.mxu0 0.0
    %91 = vmatprep.subr.mxu0 0.0
    %92 = vmatpush2.msra.mxu0 0.0
    %93 = vmatprep.subr.mxu0 0.0
    %94 = vmatpush2.msra.mxu0 0.0
    %95 = vmatprep.mubr.f32.mxu0 0.0
    %96 = vmatmul.mubr.f32.gmra.mxu0 %v25
    %v97 = vpop.f32.mrf.mxu0
    %v98 = vadd.f32 %v21, %v97
    %v99 = vpop.f32.mrf.mxu0
    %100 = vdwg.mxu0
    %v101 = vmax.f32 %v98, 0.0
    %vm102 = vcmask 130048
    %103 = vst.msk [vmem:[#allocation2] sm:$0xff] %vm102, %v101
    %s104 = scalar_lea.vmem %s0, 4
    %v105 = vld [vmem:[%s104] sm:$0xf]
    %v107 = vsel %vm27, %v105, 0
    %109 = vmatprep.subr.mxu0 0.0
    %110 = vmatpush1.msra.mxu0 0.0
    %111 = vmatprep.subr.mxu0 0.0
    %112 = vmatpush1.msra.mxu0 0.0
    %113 = vmatprep.subr.mxu0 0.0
    %114 = vmatpush1.msra.mxu0 0.0
    %115 = vmatprep.subr.mxu0 0.0
    %116 = vmatpush1.msra.mxu0 0.0
    %117 = vmatprep.subr.mxu0 0.0
    %118 = vmatpush1.msra.mxu0 0.0
    %119 = vmatprep.subr.mxu0 0.0
    %120 = vmatpush1.msra.mxu0 0.0
    %121 = vmatprep.subr.mxu0 0.0
    %122 = vmatpush1.msra.mxu0 0.0
    %123 = vmatprep.subr.mxu0 0.0
    %124 = vmatpush1.msra.mxu0 0.0
    %125 = vmatprep.subr.mxu0 0.0
    %126 = vmatpush1.msra.mxu0 0.0
    %127 = vmatprep.subr.mxu0 0.0
    %128 = vmatpush1.msra.mxu0 0.0
    %129 = vmatprep.subr.mxu0 0.0
    %130 = vmatpush1.msra.mxu0 0.0
    %131 = vmatprep.subr.mxu0 0.0
    %132 = vmatpush1.msra.mxu0 0.0
    %133 = vmatprep.subr.mxu0 0.0
    %134 = vmatpush1.msra.mxu0 0.0
    %135 = vmatprep.subr.mxu0 0.0
    %136 = vmatpush1.msra.mxu0 0.0
    %137 = vmatprep.subr.mxu0 0.0
    %138 = vmatpush1.msra.mxu0 0.0
    %139 = vmatprep.subr.mxu0 0.0
    %140 = vmatpush1.msra.mxu0 %v107
    %141 = vmatprep.subr.mxu0 0.0
    %142 = vmatpush2.msra.mxu0 0.0
    %143 = vmatprep.subr.mxu0 0.0
    %144 = vmatpush2.msra.mxu0 0.0
    %145 = vmatprep.subr.mxu0 0.0
    %146 = vmatpush2.msra.mxu0 0.0
    %147 = vmatprep.subr.mxu0 0.0
    %148 = vmatpush2.msra.mxu0 0.0
    %149 = vmatprep.subr.mxu0 0.0
    %150 = vmatpush2.msra.mxu0 0.0
    %151 = vmatprep.subr.mxu0 0.0
    %152 = vmatpush2.msra.mxu0 0.0
    %153 = vmatprep.subr.mxu0 0.0
    %154 = vmatpush2.msra.mxu0 0.0
    %155 = vmatprep.subr.mxu0 0.0
    %156 = vmatpush2.msra.mxu0 0.0
    %157 = vmatprep.subr.mxu0 0.0
    %158 = vmatpush2.msra.mxu0 0.0
    %159 = vmatprep.subr.mxu0 0.0
    %160 = vmatpush2.msra.mxu0 0.0
    %161 = vmatprep.subr.mxu0 0.0
    %162 = vmatpush2.msra.mxu0 0.0
    %163 = vmatprep.subr.mxu0 0.0
    %164 = vmatpush2.msra.mxu0 0.0
    %165 = vmatprep.subr.mxu0 0.0
    %166 = vmatpush2.msra.mxu0 0.0
    %167 = vmatprep.subr.mxu0 0.0
    %168 = vmatpush2.msra.mxu0 0.0
    %169 = vmatprep.subr.mxu0 0.0
    %170 = vmatpush2.msra.mxu0 0.0
    %171 = vmatprep.subr.mxu0 0.0
    %172 = vmatpush2.msra.mxu0 0.0
    %173 = vmatprep.mubr.f32.mxu0 0.0
    %174 = vmatmul.mubr.f32.gmra.mxu0 %v25
    %v175 = vpop.f32.mrf.mxu0
    %v176 = vadd.f32 %v21, %v175
    %v177 = vpop.f32.mrf.mxu0
    %178 = vdwg.mxu0
    %v179 = vmax.f32 %v176, 0.0
    %s180 = scalar_lea.vmem [#allocation2], 8
    %181 = vst.msk [vmem:[%s180] sm:$0xff] %vm102, %v179
    // Predicated region
    $region14: #{tpu_custom_call.1} parent=1 // pred_check
      _
    $region15: #{tpu_custom_call.1} parent=1 // pred_check_branch
      %183 = sbr.rel (0) target = $region17
    $region16: #{tpu_custom_call.1} parent=1 // pred_region
      %s185 = ssub.s32 256, 256
      %186 = vsyncadd [#allocation3], %s185
      %s187 = sshll.u32 [#allocation2], 4
      %s188 = int_to_ptr.vmem [resolvable:$true] %s187
      %193 = dma.vmem_to_hbm [thread:$0]  %s188, 256, %s3, [#allocation3], 128, 128, 8
    $region17: #{tpu_custom_call.1} parent=1 // pred_fallthru
      _
    // Predicated region
    $region18: #{tpu_custom_call.1} parent=1 // pred_check
      _
    $region19: #{tpu_custom_call.1} parent=1 // pred_check_branch
      %195 = sbr.rel (0) target = $region21
    $region20: #{tpu_custom_call.1} parent=1 // pred_region
      %196 = dma.done [#allocation3], 256
    $region21: #{tpu_custom_call.1} parent=1 // pred_fallthru
      _
    %197 = vsyncpa [#allocation3], 1

</llo_original>
